<compile_context>
chip_gen: v5e
topology: v5e:2x2
jax: 0.10.0
libtpu: 0.0.40
codegen_flags: <defaults>
</compile_context>

<pallas_src>
import functools

import jax
import jax.numpy as jnp
from jax.experimental import pallas as pl
from jax.experimental.pallas import tpu as pltpu


# ----------------------------- Pallas kernel ------------------------------ #

def _conv_gemm_kernel(lhs_ref, w_ref, o_ref):
    """One grid step = one (block_m, 9*Cin) x (9*Cin, Cout_pad) MXU matmul.

    lhs_ref: (block_m, 9*Cin)    bf16 — im2col rows (valid output positions only)
    w_ref:   (9*Cin, Cout_pad)   bf16 — 3x3 conv weights flattened to a GEMM RHS
    o_ref:   (block_m, Cout_pad)      — lane-dense output block
    """
    o_ref[...] = jnp.dot(lhs_ref[...], w_ref[...],
                         preferred_element_type=jnp.float32).astype(o_ref.dtype)


# --------------------------- conv3x3 as a GEMM ----------------------------- #

def _im2col_3x3_same(x_nchw):
    """(N, C, H, W) -> (N*H*W, 9*C) im2col rows for a 3x3/stride-1/SAME conv.

    Only valid output positions are materialized (no padding-ring rows), so at
    3x3 feature maps the GEMM does exactly N*9 rows of work instead of N*25.
    Row layout per output position: [tap(0,0) C chans, tap(0,1) C chans, ...].
    """
    n, c, h, w = x_nchw.shape
    x_pad = jnp.pad(jnp.transpose(x_nchw, (0, 2, 3, 1)),
                    ((0, 0), (1, 1), (1, 1), (0, 0)))          # (n, h+2, w+2, c)
    taps = [x_pad[:, dy:dy + h, dx:dx + w, :]                  # (n, h, w, c)
            for dy in range(3) for dx in range(3)]
    patches = jnp.stack(taps, axis=3)                          # (n, h, w, 9, c)
    return patches.reshape(n * h * w, 9 * c)


def _weights_to_gemm(w_oihw, cout_pad):
    """(Cout, Cin, 3, 3) -> (9*Cin, Cout_pad): tap-major rows, zero-padded lanes."""
    cout, cin = w_oihw.shape[0], w_oihw.shape[1]
    w_mat = jnp.transpose(w_oihw, (2, 3, 1, 0)).reshape(9 * cin, cout)
    if cout_pad > cout:
        w_mat = jnp.pad(w_mat, ((0, 0), (0, cout_pad - cout)))
    return w_mat


def _conv_gemm_pallas(lhs, w_mat, *, n_reps=1, out_dtype=jnp.float32,
                      block_m=128):
    """GEMM out[i] = lhs_block[i] @ w_mat, repeated n_reps times per block.

    The repeat is an inner "arbitrary" grid axis whose index is ignored by all
    index_maps: the LHS block is fetched once per M block, the weight slab is
    fetched once total, and the revisited output block is only written back
    when the M index advances (results of the repeats are identical and, in
    the timing path, discarded anyway).
    """
    m, k = lhs.shape
    k2, cout_p = w_mat.shape
    assert k == k2 and cout_p % 128 == 0

    mp = pl.cdiv(m, block_m) * block_m
    if mp > m:
        lhs = jnp.pad(lhs, ((0, mp - m), (0, 0)))
    lhs = lhs.astype(jnp.bfloat16)
    w_mat = w_mat.astype(jnp.bfloat16)

    # TODO(synk): at the real VGG shapes (Cin=Cout=512 -> K=4608, Cout_pad=512)
    # tile K with an f32 VMEM scratch accumulator + pl.when init/flush and give
    # the LHS a windowed BlockSpec so the working set fits v7x's 64 MiB VMEM
    # (set vmem_limit_bytes explicitly); at these toy shapes everything fits
    # comfortably in the default scoped VMEM.
    return pl.pallas_call(
        _conv_gemm_kernel,
        out_shape=jax.ShapeDtypeStruct((mp, cout_p), out_dtype),
        grid=(mp // block_m, n_reps),
        in_specs=[
            pl.BlockSpec((block_m, k), lambda i, r: (i, 0)),
            pl.BlockSpec((k, cout_p), lambda i, r: (0, 0)),
        ],
        out_specs=pl.BlockSpec((block_m, cout_p), lambda i, r: (i, 0)),
        compiler_params=pltpu.CompilerParams(
            # M blocks are independent (megacore-shardable); the repeat axis
            # revisits the same output block, so it must stay "arbitrary".
            dimension_semantics=("parallel", "arbitrary"),
        ),
    )(lhs, w_mat)


def conv3x3_pallas(x_nchw, w_oihw, *, block_m=128):
    """3x3 conv, stride 1, padding 1, no bias (matches builder.conv3x3).

    Full-fidelity path (used for the correctness check): im2col -> single-GEMM
    Pallas kernel -> crop padded rows/lanes -> back to NCHW f32.
    """
    n, c, h, w = x_nchw.shape
    cout = w_oihw.shape[0]
    cout_p = ((cout + 127) // 128) * 128

    lhs = _im2col_3x3_same(x_nchw)
    w_mat = _weights_to_gemm(w_oihw, cout_p)
    out = _conv_gemm_pallas(lhs, w_mat, n_reps=1,
                            out_dtype=jnp.float32, block_m=block_m)
    out = out[: n * h * w, :cout].reshape(n, h, w, cout)
    return jnp.transpose(out, (0, 3, 1, 2))


# ------------------------------- VGG19.forward ----------------------------- #

@functools.partial(jax.jit, static_argnames=("n_timing_iters",))
def _timing_loop_conv(x, w, n_timing_iters):
    """forward()'s timing loop: n_timing_iters convs of the same x, fused into
    ONE kernel launch via an inner grid axis (no jnp.tile replication of the
    input, no f32 NCHW epilogue -- results are discarded by forward()).
    Returning the bf16 GEMM output keeps XLA from dead-code-eliminating the
    work under jit."""
    cout = w.shape[0]
    cout_p = ((cout + 127) // 128) * 128
    lhs = _im2col_3x3_same(x)
    w_mat = _weights_to_gemm(w, cout_p)
    return _conv_gemm_pallas(lhs, w_mat, n_reps=n_timing_iters,
                             out_dtype=jnp.bfloat16, block_m=128)


def vgg19_forward(x_input, key, n_timing_iters=4):
    """Reproduces VGG19.forward semantics (scaled-down shapes).

    The module's __init__ parameters (conv1..conv16, bn*_w/b, linear) are
    never touched by forward(), so only the temporary conv weight used in the
    timing loop is initialized here (deterministically from `key`).
    """
    del x_input  # forward() ignores its argument, exactly like the torch code

    # Scaled down from torch.randn(256, 512, 3, 3) and conv3x3(512, 512).
    Nb, C, H, W = 8, 32, 3, 3
    kx, kw = jax.random.split(key)
    x = jax.random.normal(kx, (Nb, C, H, W), jnp.float32)
    w = jax.random.normal(kw, (C, C, 3, 3), jnp.float32) / jnp.sqrt(9.0 * C)

    # Timing loop (reduced count); results discarded, like the torch code.
    # TODO(synk): builder.conv3x3 returns (y, mask) from a pruning builder;
    # the mask has no definition in the provided spec and is not reproducible.
    y = _timing_loop_conv(x, w, n_timing_iters)
    jax.block_until_ready(y)

    # return x.squeeze(): squeeze is a no-op for (Nb, C, 3, 3).
    return jnp.squeeze(x)


# ----------------------------------- main ---------------------------------- #

if __name__ == "__main__":
    key = jax.random.PRNGKey(0)
    k_in, k_fwd, k_chk = jax.random.split(key, 3)

    conv_jit = jax.jit(conv3x3_pallas)

    def _ref_conv(x, w):
        # Reference on the same bf16-rounded operands (kernel accumulates f32).
        return jax.lax.conv_general_dilated(
            x.astype(jnp.bfloat16).astype(jnp.float32),
            w.astype(jnp.bfloat16).astype(jnp.float32),
            window_strides=(1, 1), padding="SAME",
            dimension_numbers=("NCHW", "OIHW", "NCHW"),
            precision=jax.lax.Precision.HIGHEST)

    # Check A: the exact shape class used by the timing loop (3x3 feature map).
    ka, kb = jax.random.split(k_chk)
    xa = jax.random.normal(ka, (2, 32, 3, 3), jnp.float32)
    wa = jax.random.normal(kb, (32, 32, 3, 3), jnp.float32) / jnp.sqrt(288.0)
    ya, ra = conv_jit(xa, wa), _ref_conv(xa, wa)
    assert ya.shape == ra.shape
    assert bool(jnp.allclose(ya, ra, atol=5e-2, rtol=5e-2)), (
        float(jnp.max(jnp.abs(ya - ra))))

    # Check B: multi-block M grid (16x16 map -> 512 rows -> 4 M blocks) and a
    # Cout (24) that exercises the 128-lane zero-padding / crop path.
    kc, kd = jax.random.split(ka)
    xb = jax.random.normal(kc, (2, 16, 16, 16), jnp.float32)
    wb = jax.random.normal(kd, (24, 16, 3, 3), jnp.float32) / jnp.sqrt(144.0)
    yb, rb = conv_jit(xb, wb), _ref_conv(xb, wb)
    assert yb.shape == rb.shape
    assert bool(jnp.allclose(yb, rb, atol=5e-2, rtol=5e-2)), (
        float(jnp.max(jnp.abs(yb - rb))))

    # Module-level input (NCHW, 3 channels as VGG expects) — ignored by forward.
    x_in = jax.random.normal(k_in, (2, 3, 16, 16), jnp.float32)
    out = vgg19_forward(x_in, k_fwd)
    jax.block_until_ready(out)

    assert out.shape == (8, 32, 3, 3)
    print("KERNEL_OK")
</pallas_src>

<mosaic_0001>
module attributes {stable_mosaic.version = 11 : i64} {
  func.func @_conv_gemm_kernel(%arg0: i32, %arg1: i32, %arg2: memref<128x288xbf16, #tpu.memory_space<vmem>>, %arg3: memref<288x128xbf16, #tpu.memory_space<vmem>>, %arg4: memref<128x128xf32, #tpu.memory_space<vmem>>) attributes {dimension_semantics = [#tpu.dimension_semantics<parallel>, #tpu.dimension_semantics<arbitrary>], iteration_bounds = array<i64: 1, 1>, scalar_prefetch = 0 : i64, scratch_operands = 0 : i64, tpu.core_type = #tpu.core_type<tc>, window_params = [{transform_indices = @transform_0, window_bounds = array<i64: 128, 288>}, {pipeline_mode = #tpu.pipeline_mode<synchronous>, transform_indices = @transform_1, window_bounds = array<i64: 288, 128>}, {transform_indices = @transform_2, window_bounds = array<i64: 128, 128>}]} {
    %c0 = arith.constant 0 : index
    %c0_0 = arith.constant 0 : index
    %0 = vector.load %arg2[%c0, %c0_0] : memref<128x288xbf16, #tpu.memory_space<vmem>>, vector<128x288xbf16>
    %c0_1 = arith.constant 0 : index
    %c0_2 = arith.constant 0 : index
    %1 = vector.load %arg3[%c0_1, %c0_2] : memref<288x128xbf16, #tpu.memory_space<vmem>>, vector<288x128xbf16>
    %cst = arith.constant dense<0.000000e+00> : vector<128x128xf32>
    %2 = tpu.matmul %0, %1, %cst {dimension_numbers = #tpu.dot_dimension_numbers<[1], [0], [0], [1], [0, 0, 1, 1], [], []>} : vector<128x288xbf16>, vector<288x128xbf16>, vector<128x128xf32> -> vector<128x128xf32>
    %c0_3 = arith.constant 0 : index
    %c0_4 = arith.constant 0 : index
    %3 = vector.load %arg4[%c0_3, %c0_4] : memref<128x128xf32, #tpu.memory_space<vmem>>, vector<128x128xf32>
    tpu.vector_store %arg4[%c0_3, %c0_4], %2 {strides = array<i32>} : memref<128x128xf32, #tpu.memory_space<vmem>>, vector<128x128xf32>,
    return
  }
  func.func @transform_0(%arg0: i32, %arg1: i32) -> (i32, i32) {
    %c0_i32 = arith.constant 0 : i32
    %c0_i32_0 = arith.constant 0 : i32
    return %arg0, %c0_i32 : i32, i32
  }
  func.func @transform_1(%arg0: i32, %arg1: i32) -> (i32, i32) {
    %c0_i32 = arith.constant 0 : i32
    %c0_i32_0 = arith.constant 0 : i32
    %c0_i32_1 = arith.constant 0 : i32
    return %c0_i32, %c0_i32_0 : i32, i32
  }
  func.func @transform_2(%arg0: i32, %arg1: i32) -> (i32, i32) {
    %c0_i32 = arith.constant 0 : i32
    %c0_i32_0 = arith.constant 0 : i32
    return %arg0, %c0_i32 : i32, i32
  }
}

</mosaic_0001>

<llo_original>
// kernel: conv3x3_pallas.1
$region0: #{conv3x3_pallas.1}
  #allocation0 [shape = 'u32[]', space=smem, size = 0x4, offset = 0x4, fixed_abs, tag = 'smem constant byte address 0x4 - core index']
  #allocation1 [shape = 'u32[72,128]{1,0:T(1,128)}', space=vmem, size = 0x9000, scoped, tag = 'internal scratch']
  %s0 = inlined_call_operand.vmem [shape: bf16[128,288], index: 0, kind: input, shape index: {}]
  %s1 = inlined_call_operand.vmem [shape: bf16[288,128], index: 1, kind: input, shape index: {}]
  %s2 = inlined_call_operand.vmem [shape: f32[128,128], index: 2, kind: output, shape index: {}]
  %s3 = sld [smem:[#allocation0]]
  $region18: #{conv3x3_pallas.1} parent=0
    _
  %s5 = ssub.s32 1, %s3
  %s6 = scalar_select 0, %s5, %s3
  // Predicated region
  $region2: #{conv3x3_pallas.1} parent=0 // pred_check
    _
  $region3: #{conv3x3_pallas.1} parent=0 // pred_check_branch
    %8 = sbr.rel (0) target = $region5
  $region4: #{conv3x3_pallas.1} parent=0 // pred_region
    _
  $region5: #{conv3x3_pallas.1} parent=0 // pred_fallthru
    _
  // Predicated region
  $region6: #{conv3x3_pallas.1} parent=0 // pred_check
    _
  $region7: #{conv3x3_pallas.1} parent=0 // pred_check_branch
    %10 = sbr.rel (0) target = $region9
  $region8: #{conv3x3_pallas.1} parent=0 // pred_region
    _
  $region9: #{conv3x3_pallas.1} parent=0 // pred_fallthru
    _
  %v12 = vld [vmem:[%s0] sm:$0xff]
  %v13 = vld [vmem:[%s0 + $0x8] sm:$0xf]
  %v14 = vld [vmem:[%s0 + $0xc] sm:$0xff]
  %v15 = vld [vmem:[%s0 + $0x14] sm:$0xf]
  %v16 = vld [vmem:[%s0 + $0x18] sm:$0xff]
  %v17 = vld [vmem:[%s0 + $0x20] sm:$0xf]
  %v18 = vld [vmem:[%s0 + $0x24] sm:$0xff]
  %v19 = vld [vmem:[%s0 + $0x2c] sm:$0xf]
  %v20 = vld [vmem:[%s0 + $0x30] sm:$0xff]
  %v21 = vld [vmem:[%s0 + $0x38] sm:$0xf]
  %v22 = vld [vmem:[%s0 + $0x3c] sm:$0xff]
  %v23 = vld [vmem:[%s0 + $0x44] sm:$0xf]
  %v24 = vld [vmem:[%s0 + $0x48] sm:$0xff]
  %v25 = vld [vmem:[%s0 + $0x50] sm:$0xf]
  %v26 = vld [vmem:[%s0 + $0x54] sm:$0xff]
  %v27 = vld [vmem:[%s0 + $0x5c] sm:$0xf]
  %v28 = vld [vmem:[%s0 + $0x60] sm:$0xff]
  %v29 = vld [vmem:[%s0 + $0x68] sm:$0xf]
  %v30 = vld [vmem:[%s0 + $0x6c] sm:$0xff]
  %v31 = vld [vmem:[%s0 + $0x74] sm:$0xf]
  %v32 = vld [vmem:[%s0 + $0x78] sm:$0xff]
  %v33 = vld [vmem:[%s0 + $0x80] sm:$0xf]
  %v34 = vld [vmem:[%s0 + $0x84] sm:$0xff]
  %v35 = vld [vmem:[%s0 + $0x8c] sm:$0xf]
  %v36 = vld [vmem:[%s0 + $0x90] sm:$0xff]
  %v37 = vld [vmem:[%s0 + $0x98] sm:$0xf]
  %v38 = vld [vmem:[%s0 + $0x9c] sm:$0xff]
  %v39 = vld [vmem:[%s0 + $0xa4] sm:$0xf]
  %v40 = vld [vmem:[%s0 + $0xa8] sm:$0xff]
  %v41 = vld [vmem:[%s0 + $0xb0] sm:$0xf]
  %v42 = vld [vmem:[%s0 + $0xb4] sm:$0xff]
  %v43 = vld [vmem:[%s0 + $0xbc] sm:$0xf]
  %v44 = vld [vmem:[%s1] sm:$0xf]
  %v45 = vld [vmem:[%s1 + $0x4] sm:$0xf]
  %v46 = vld [vmem:[%s1 + $0x8] sm:$0xf]
  %v47 = vld [vmem:[%s1 + $0xc] sm:$0xf]
  %v48 = vld [vmem:[%s1 + $0x10] sm:$0xf]
  %v49 = vld [vmem:[%s1 + $0x14] sm:$0xf]
  %v50 = vld [vmem:[%s1 + $0x18] sm:$0xf]
  %v51 = vld [vmem:[%s1 + $0x1c] sm:$0xf]
  %v52 = vld [vmem:[%s1 + $0x20] sm:$0xf]
  %v53 = vld [vmem:[%s1 + $0x24] sm:$0xf]
  %v54 = vld [vmem:[%s1 + $0x28] sm:$0xf]
  %v55 = vld [vmem:[%s1 + $0x2c] sm:$0xf]
  %v56 = vld [vmem:[%s1 + $0x30] sm:$0xf]
  %v57 = vld [vmem:[%s1 + $0x34] sm:$0xf]
  %v58 = vld [vmem:[%s1 + $0x38] sm:$0xf]
  %v59 = vld [vmem:[%s1 + $0x3c] sm:$0xf]
  %v60 = vld [vmem:[%s1 + $0x40] sm:$0xf]
  %v61 = vld [vmem:[%s1 + $0x44] sm:$0xf]
  %v62 = vld [vmem:[%s1 + $0x48] sm:$0xf]
  %v63 = vld [vmem:[%s1 + $0x4c] sm:$0xf]
  %v64 = vld [vmem:[%s1 + $0x50] sm:$0xf]
  %v65 = vld [vmem:[%s1 + $0x54] sm:$0xf]
  %v66 = vld [vmem:[%s1 + $0x58] sm:$0xf]
  %v67 = vld [vmem:[%s1 + $0x5c] sm:$0xf]
  %v68 = vld [vmem:[%s1 + $0x60] sm:$0xf]
  %v69 = vld [vmem:[%s1 + $0x64] sm:$0xf]
  %v70 = vld [vmem:[%s1 + $0x68] sm:$0xf]
  %v71 = vld [vmem:[%s1 + $0x6c] sm:$0xf]
  %v72 = vld [vmem:[%s1 + $0x70] sm:$0xf]
  %v73 = vld [vmem:[%s1 + $0x74] sm:$0xf]
  %v74 = vld [vmem:[%s1 + $0x78] sm:$0xf]
  %v75 = vld [vmem:[%s1 + $0x7c] sm:$0xf]
  %v76 = vld [vmem:[%s1 + $0x80] sm:$0xf]
  %v77 = vld [vmem:[%s1 + $0x84] sm:$0xf]
  %v78 = vld [vmem:[%s1 + $0x88] sm:$0xf]
  %v79 = vld [vmem:[%s1 + $0x8c] sm:$0xf]
  %v112 = vunpack.c.l.b16 %v12
  %v113 = vunpack.c.h.b16 %v12
  %v114 = vunpack.c.l.b16 %v13
  %v115 = vunpack.c.l.b16 %v14
  %v116 = vunpack.c.h.b16 %v14
  %v117 = vunpack.c.l.b16 %v15
  %v118 = vunpack.c.l.b16 %v16
  %v119 = vunpack.c.h.b16 %v16
  %v120 = vunpack.c.l.b16 %v17
  %v121 = vunpack.c.l.b16 %v18
  %v122 = vunpack.c.h.b16 %v18
  %v123 = vunpack.c.l.b16 %v19
  %v124 = vunpack.c.l.b16 %v20
  %v125 = vunpack.c.h.b16 %v20
  %v126 = vunpack.c.l.b16 %v21
  %v127 = vunpack.c.l.b16 %v22
  %v128 = vunpack.c.h.b16 %v22
  %v129 = vunpack.c.l.b16 %v23
  %v130 = vunpack.c.l.b16 %v24
  %v131 = vunpack.c.h.b16 %v24
  %v132 = vunpack.c.l.b16 %v25
  %v133 = vunpack.c.l.b16 %v26
  %v134 = vunpack.c.h.b16 %v26
  %v135 = vunpack.c.l.b16 %v27
  %v136 = vunpack.c.l.b16 %v28
  %v137 = vunpack.c.h.b16 %v28
  %v138 = vunpack.c.l.b16 %v29
  %v139 = vunpack.c.l.b16 %v30
  %v140 = vunpack.c.h.b16 %v30
  %v141 = vunpack.c.l.b16 %v31
  %v142 = vunpack.c.l.b16 %v32
  %v143 = vunpack.c.h.b16 %v32
  %v144 = vunpack.c.l.b16 %v33
  %v145 = vunpack.c.l.b16 %v34
  %v146 = vunpack.c.h.b16 %v34
  %v147 = vunpack.c.l.b16 %v35
  %v148 = vunpack.c.l.b16 %v36
  %v149 = vunpack.c.h.b16 %v36
  %v150 = vunpack.c.l.b16 %v37
  %v151 = vunpack.c.l.b16 %v38
  %v152 = vunpack.c.h.b16 %v38
  %v153 = vunpack.c.l.b16 %v39
  %v154 = vunpack.c.l.b16 %v40
  %v155 = vunpack.c.h.b16 %v40
  %v156 = vunpack.c.l.b16 %v41
  %v157 = vunpack.c.l.b16 %v42
  %v158 = vunpack.c.h.b16 %v42
  %v159 = vunpack.c.l.b16 %v43
  %v160 = vpack.c.b16 %v115, %v112
  %v161 = vpack.c.b16 %v116, %v113
  %v162 = vpack.c.b16 %v117, %v114
  %v163 = vpack.c.b16 %v121, %v118
  %v164 = vpack.c.b16 %v122, %v119
  %v165 = vpack.c.b16 %v123, %v120
  %v166 = vpack.c.b16 %v127, %v124
  %v167 = vpack.c.b16 %v128, %v125
  %v168 = vpack.c.b16 %v129, %v126
  %v169 = vpack.c.b16 %v133, %v130
  %v170 = vpack.c.b16 %v134, %v131
  %v171 = vpack.c.b16 %v135, %v132
  %v172 = vpack.c.b16 %v139, %v136
  %v173 = vpack.c.b16 %v140, %v137
  %v174 = vpack.c.b16 %v141, %v138
  %v175 = vpack.c.b16 %v145, %v142
  %v176 = vpack.c.b16 %v146, %v143
  %v177 = vpack.c.b16 %v147, %v144
  %v178 = vpack.c.b16 %v151, %v148
  %v179 = vpack.c.b16 %v152, %v149
  %v180 = vpack.c.b16 %v153, %v150
  %v181 = vpack.c.b16 %v157, %v154
  %v182 = vpack.c.b16 %v158, %v155
  %v183 = vpack.c.b16 %v159, %v156
  %v236 = vunpack.c.l.b16 %v44
  %v237 = vunpack.c.l.b16 %v45
  %v238 = vunpack.c.l.b16 %v46
  %v239 = vunpack.c.l.b16 %v47
  %v240 = vunpack.c.l.b16 %v48
  %v241 = vunpack.c.l.b16 %v49
  %v242 = vunpack.c.l.b16 %v50
  %v243 = vunpack.c.l.b16 %v51
  %v244 = vunpack.c.l.b16 %v52
  %v245 = vunpack.c.l.b16 %v53
  %v246 = vunpack.c.l.b16 %v54
  %v247 = vunpack.c.l.b16 %v55
  %v248 = vunpack.c.l.b16 %v56
  %v249 = vunpack.c.l.b16 %v57
  %v250 = vunpack.c.l.b16 %v58
  %v251 = vunpack.c.l.b16 %v59
  %v252 = vunpack.c.l.b16 %v60
  %v253 = vunpack.c.l.b16 %v61
  %v254 = vunpack.c.l.b16 %v62
  %v255 = vunpack.c.l.b16 %v63
  %v256 = vunpack.c.l.b16 %v64
  %v257 = vunpack.c.l.b16 %v65
  %v258 = vunpack.c.l.b16 %v66
  %v259 = vunpack.c.l.b16 %v67
  %v260 = vunpack.c.l.b16 %v68
  %v261 = vunpack.c.l.b16 %v69
  %v262 = vunpack.c.l.b16 %v70
  %v263 = vunpack.c.l.b16 %v71
  %v264 = vunpack.c.l.b16 %v72
  %v265 = vunpack.c.l.b16 %v73
  %v266 = vunpack.c.l.b16 %v74
  %v267 = vunpack.c.l.b16 %v75
  %v268 = vunpack.c.l.b16 %v76
  %v269 = vunpack.c.l.b16 %v77
  %v270 = vunpack.c.l.b16 %v78
  %v271 = vunpack.c.l.b16 %v79
  %v272 = vpack.c.b16 %v237, %v236
  %v273 = vpack.c.b16 %v239, %v238
  %v274 = vpack.c.b16 %v241, %v240
  %v275 = vpack.c.b16 %v243, %v242
  %v276 = vpack.c.b16 %v245, %v244
  %v277 = vpack.c.b16 %v247, %v246
  %v278 = vpack.c.b16 %v249, %v248
  %v279 = vpack.c.b16 %v251, %v250
  %v280 = vpack.c.b16 %v253, %v252
  %v281 = vpack.c.b16 %v255, %v254
  %v282 = vpack.c.b16 %v257, %v256
  %v283 = vpack.c.b16 %v259, %v258
  %v284 = vpack.c.b16 %v261, %v260
  %v285 = vpack.c.b16 %v263, %v262
  %v286 = vpack.c.b16 %v265, %v264
  %v287 = vpack.c.b16 %v267, %v266
  %v288 = vpack.c.b16 %v269, %v268
  %v289 = vpack.c.b16 %v271, %v270
  %vm308 = vcmask 261120
  %v310 = vsel %vm308, %v162, 0
  %v313 = vsel %vm308, %v165, 0
  %v316 = vsel %vm308, %v168, 0
  %v319 = vsel %vm308, %v171, 0
  %v322 = vsel %vm308, %v174, 0
  %v325 = vsel %vm308, %v177, 0
  %v328 = vsel %vm308, %v180, 0
  %v331 = vsel %vm308, %v183, 0
  %333 = vmatpush.bf16.msra.mxu0 %v279
  %334 = vmatpush.bf16.msra.mxu0 %v278
  %335 = vmatpush.bf16.msra.mxu0 %v277
  %336 = vmatpush.bf16.msra.mxu0 %v276
  %337 = vmatpush.bf16.msra.mxu0 %v275
  %338 = vmatpush.bf16.msra.mxu0 %v274
  %339 = vmatpush.bf16.msra.mxu0 %v273
  %340 = vmatpush.bf16.msra.mxu0 %v272
  %341 = vmatmul.bf16.gmra.mxu0 %v160
  %v342 = vpop.f32.mrf.mxu0
  %v343 = vadd.f32 0.0, %v342
  %v344 = vpop.f32.mrf.mxu0
  %v345 = vadd.f32 0.0, %v344
  %346 = vmatmul.bf16.gmra.mxu0 %v163
  %v347 = vpop.f32.mrf.mxu0
  %v348 = vadd.f32 0.0, %v347
  %v349 = vpop.f32.mrf.mxu0
  %v350 = vadd.f32 0.0, %v349
  %351 = vmatmul.bf16.gmra.mxu0 %v166
  %v352 = vpop.f32.mrf.mxu0
  %v353 = vadd.f32 0.0, %v352
  %v354 = vpop.f32.mrf.mxu0
  %v355 = vadd.f32 0.0, %v354
  %356 = vmatmul.bf16.gmra.mxu0 %v169
  %v357 = vpop.f32.mrf.mxu0
  %v358 = vadd.f32 0.0, %v357
  %v359 = vpop.f32.mrf.mxu0
  %v360 = vadd.f32 0.0, %v359
  %361 = vmatmul.bf16.gmra.mxu0 %v172
  %v362 = vpop.f32.mrf.mxu0
  %v363 = vadd.f32 0.0, %v362
  %v364 = vpop.f32.mrf.mxu0
  %v365 = vadd.f32 0.0, %v364
  %366 = vmatmul.bf16.gmra.mxu0 %v175
  %v367 = vpop.f32.mrf.mxu0
  %v368 = vadd.f32 0.0, %v367
  %v369 = vpop.f32.mrf.mxu0
  %v370 = vadd.f32 0.0, %v369
  %371 = vmatmul.bf16.gmra.mxu0 %v178
  %v372 = vpop.f32.mrf.mxu0
  %v373 = vadd.f32 0.0, %v372
  %v374 = vpop.f32.mrf.mxu0
  %v375 = vadd.f32 0.0, %v374
  %376 = vmatmul.bf16.gmra.mxu0 %v181
  %v377 = vpop.f32.mrf.mxu0
  %v378 = vadd.f32 0.0, %v377
  %v379 = vpop.f32.mrf.mxu0
  %v380 = vadd.f32 0.0, %v379
  %381 = vdwg.mxu0
  %382 = vmatpush.bf16.msra.mxu0 %v287
  %383 = vmatpush.bf16.msra.mxu0 %v286
  %384 = vmatpush.bf16.msra.mxu0 %v285
  %385 = vmatpush.bf16.msra.mxu0 %v284
  %386 = vmatpush.bf16.msra.mxu0 %v283
  %387 = vmatpush.bf16.msra.mxu0 %v282
  %388 = vmatpush.bf16.msra.mxu0 %v281
  %389 = vmatpush.bf16.msra.mxu0 %v280
  %390 = vmatmul.bf16.gmra.mxu0 %v161
  %v391 = vpop.f32.mrf.mxu0
  %v392 = vadd.f32 %v343, %v391
  %v393 = vpop.f32.mrf.mxu0
  %v394 = vadd.f32 %v345, %v393
  %395 = vmatmul.bf16.gmra.mxu0 %v164
  %v396 = vpop.f32.mrf.mxu0
  %v397 = vadd.f32 %v348, %v396
  %v398 = vpop.f32.mrf.mxu0
  %v399 = vadd.f32 %v350, %v398
  %400 = vmatmul.bf16.gmra.mxu0 %v167
  %v401 = vpop.f32.mrf.mxu0
  %v402 = vadd.f32 %v353, %v401
  %v403 = vpop.f32.mrf.mxu0
  %v404 = vadd.f32 %v355, %v403
  %405 = vmatmul.bf16.gmra.mxu0 %v170
  %v406 = vpop.f32.mrf.mxu0
  %v407 = vadd.f32 %v358, %v406
  %v408 = vpop.f32.mrf.mxu0
  %v409 = vadd.f32 %v360, %v408
  %410 = vmatmul.bf16.gmra.mxu0 %v173
  %v411 = vpop.f32.mrf.mxu0
  %v412 = vadd.f32 %v363, %v411
  %v413 = vpop.f32.mrf.mxu0
  %v414 = vadd.f32 %v365, %v413
  %415 = vmatmul.bf16.gmra.mxu0 %v176
  %v416 = vpop.f32.mrf.mxu0
  %v417 = vadd.f32 %v368, %v416
  %v418 = vpop.f32.mrf.mxu0
  %v419 = vadd.f32 %v370, %v418
  %420 = vmatmul.bf16.gmra.mxu0 %v179
  %v421 = vpop.f32.mrf.mxu0
  %v422 = vadd.f32 %v373, %v421
  %v423 = vpop.f32.mrf.mxu0
  %v424 = vadd.f32 %v375, %v423
  %425 = vmatmul.bf16.gmra.mxu0 %v182
  %v426 = vpop.f32.mrf.mxu0
  %v427 = vadd.f32 %v378, %v426
  %v428 = vpop.f32.mrf.mxu0
  %v429 = vadd.f32 %v380, %v428
  %430 = vdwg.mxu0
  %431 = vmatpush.bf16.msra.mxu0 0
  %432 = vmatpush.bf16.msra.mxu0 0
  %433 = vmatpush.bf16.msra.mxu0 0
  %434 = vmatpush.bf16.msra.mxu0 0
  %435 = vmatpush.bf16.msra.mxu0 0
  %436 = vmatpush.bf16.msra.mxu0 0
  %437 = vmatpush.bf16.msra.mxu0 %v289
  %438 = vmatpush.bf16.msra.mxu0 %v288
  %439 = vmatmul.bf16.gmra.mxu0 %v310
  %v440 = vpop.f32.mrf.mxu0
  %v441 = vadd.f32 %v392, %v440
  %v442 = vpop.f32.mrf.mxu0
  %v443 = vadd.f32 %v394, %v442
  %444 = vmatmul.bf16.gmra.mxu0 %v313
  %v445 = vpop.f32.mrf.mxu0
  %v446 = vadd.f32 %v397, %v445
  %v447 = vpop.f32.mrf.mxu0
  %v448 = vadd.f32 %v399, %v447
  %449 = vmatmul.bf16.gmra.mxu0 %v316
  %v450 = vpop.f32.mrf.mxu0
  %v451 = vadd.f32 %v402, %v450
  %v452 = vpop.f32.mrf.mxu0
  %v453 = vadd.f32 %v404, %v452
  %454 = vmatmul.bf16.gmra.mxu0 %v319
  %v455 = vpop.f32.mrf.mxu0
  %v456 = vadd.f32 %v407, %v455
  %v457 = vpop.f32.mrf.mxu0
  %v458 = vadd.f32 %v409, %v457
  %459 = vmatmul.bf16.gmra.mxu0 %v322
  %v460 = vpop.f32.mrf.mxu0
  %v461 = vadd.f32 %v412, %v460
  %v462 = vpop.f32.mrf.mxu0
  %v463 = vadd.f32 %v414, %v462
  %464 = vmatmul.bf16.gmra.mxu0 %v325
  %v465 = vpop.f32.mrf.mxu0
  %v466 = vadd.f32 %v417, %v465
  %v467 = vpop.f32.mrf.mxu0
  %v468 = vadd.f32 %v419, %v467
  %469 = vmatmul.bf16.gmra.mxu0 %v328
  %v470 = vpop.f32.mrf.mxu0
  %v471 = vadd.f32 %v422, %v470
  %v472 = vpop.f32.mrf.mxu0
  %v473 = vadd.f32 %v424, %v472
  %474 = vmatmul.bf16.gmra.mxu0 %v331
  %v475 = vpop.f32.mrf.mxu0
  %v476 = vadd.f32 %v427, %v475
  %v477 = vpop.f32.mrf.mxu0
  %v478 = vadd.f32 %v429, %v477
  %479 = vdwg.mxu0
  %480 = vst [vmem:[%s2] sm:$0xff] %v441
  %481 = vst [vmem:[%s2 + $0x8] sm:$0xff] %v443
  %482 = vst [vmem:[%s2 + $0x10] sm:$0xff] %v446
  %483 = vst [vmem:[%s2 + $0x18] sm:$0xff] %v448
  %484 = vst [vmem:[%s2 + $0x20] sm:$0xff] %v451
  %485 = vst [vmem:[%s2 + $0x28] sm:$0xff] %v453
  %486 = vst [vmem:[%s2 + $0x30] sm:$0xff] %v456
  %487 = vst [vmem:[%s2 + $0x38] sm:$0xff] %v458
  %488 = vst [vmem:[%s2 + $0x40] sm:$0xff] %v461
  %489 = vst [vmem:[%s2 + $0x48] sm:$0xff] %v463
  %490 = vst [vmem:[%s2 + $0x50] sm:$0xff] %v466
  %491 = vst [vmem:[%s2 + $0x58] sm:$0xff] %v468
  %492 = vst [vmem:[%s2 + $0x60] sm:$0xff] %v471
  %493 = vst [vmem:[%s2 + $0x68] sm:$0xff] %v473
  %494 = vst [vmem:[%s2 + $0x70] sm:$0xff] %v476
  %495 = vst [vmem:[%s2 + $0x78] sm:$0xff] %v478
  // Predicated region
  $region10: #{conv3x3_pallas.1} parent=0 // pred_check
    _
  $region11: #{conv3x3_pallas.1} parent=0 // pred_check_branch
    %497 = sbr.rel (0) target = $region13
  $region12: #{conv3x3_pallas.1} parent=0 // pred_region
    _
  $region13: #{conv3x3_pallas.1} parent=0 // pred_fallthru
    _
  // Predicated region
  $region14: #{conv3x3_pallas.1} parent=0 // pred_check
    _
  $region15: #{conv3x3_pallas.1} parent=0 // pred_check_branch
    %499 = sbr.rel (0) target = $region17
  $region16: #{conv3x3_pallas.1} parent=0 // pred_region
    _
  $region17: #{conv3x3_pallas.1} parent=0 // pred_fallthru
    _

</llo_original>
